<compile_context>
chip_gen: v7x
topology: tpu7x:2x2x1
jax: 0.10.0
libtpu: 0.0.40
codegen_flags: <defaults>
</compile_context>

<pallas_src>
import jax
import jax.numpy as jnp
from jax.experimental import pallas as pl
from jax.experimental.pallas import tpu as pltpu

# ----- module hyper-parameters (len(filter_config) must be 4: the forward
#       hard-codes view(-1, 4*23, 84)) -------------------------------------
FILTER_WIDTHS = (3, 4, 5, 6)
FILTER_CONFIG = (4, 4, 4, 4)
ALPHA = 23                         # the "23" in the PyTorch module
EMIT_LEN = 84                      # hard-coded [:84] slice
POOL = 3                           # MaxUnpool1d(3)
L_POOLED = EMIT_LEN // POOL        # 28
C_TOTAL = sum(FILTER_CONFIG)       # 16
N_GROUPS = len(FILTER_CONFIG)      # 4

SHIFTS = (-3, -2, -1, 0, 1, 2)     # union of deconv tap shifts s = pad_g - j
QS = (-1, 0, 1)                    # pooled-domain shifts q = (p + s) // 3
N_PHASE = POOL                     # output phase p = l % 3
K_FUSED = len(QS) * POOL * C_TOTAL  # 144 contraction rows: (q, r, channel)
M_FUSED = N_PHASE * ALPHA           # 69 output rows: (phase, logit)


def _pad_for_width(k: int) -> int:
    pad = k // 2
    if k % 2 == 0:
        pad -= 1
    return pad


# --------------------------------------------------------------------------
# Pallas kernel: one block of B batch elements per grid step.
# --------------------------------------------------------------------------
def decoder_kernel(x_ref, off_ref, mask_ref, w_ref, b_ref, out_ref):
    # x_ref, off_ref : (C_TOTAL, B*28)  pooled values / within-window offsets
    # mask_ref       : (2, B*28)        segment-boundary masks for q = -1 / +1
    # w_ref          : (69, 144)        fused unpool x deconv x linear weights
    # b_ref          : (69, 1)          fused bias
    # out_ref        : (69, B*28)       transposed, phase-major output (lane-dense)
    x = x_ref[...]                                   # (16, B*28) f32
    off = off_ref[...]                               # (16, B*28) i32 in {0,1,2}
    ok_m1 = mask_ref[0:1, :]                         # valid lanes when reading w-1
    ok_p1 = mask_ref[1:2, :]                         # valid lanes when reading w+1

    # ---- MaxUnpool1d reduced to a width-3 one-hot in the pooled domain.
    m = [jnp.where(off == r, x, 0.0) for r in range(POOL)]      # 3 x (16, B*28)

    # ---- build the stacked, shifted, masked operand G (144, B*28):
    #      row (q, r, c) = m_r[c, lane + q], zeroed where lane+q crosses a
    #      28-wide per-sample segment boundary.
    zcol = jnp.zeros((C_TOTAL, 1), jnp.float32)
    pieces = []
    for q in QS:
        for r in range(POOL):
            mr = m[r]
            if q == 0:
                piece = mr
            elif q == 1:   # value at lane L must be m_r[:, L+1]
                piece = jnp.concatenate([mr[:, 1:], zcol], axis=1) * ok_p1
            else:          # q == -1: value at lane L must be m_r[:, L-1]
                piece = jnp.concatenate([zcol, mr[:, :-1]], axis=1) * ok_m1
            pieces.append(piece)
    g_stack = jnp.concatenate(pieces, axis=0)                    # (144, B*28)

    # ---- single fused MXU matmul (deconv taps + group concat + Linear).
    out = jnp.dot(w_ref[...], g_stack, preferred_element_type=jnp.float32)
    out_ref[...] = out + b_ref[...]                              # (69, B*28)


# --------------------------------------------------------------------------
# Wrapper-side weight fusion (pure layout/weight algebra, done once per call).
# --------------------------------------------------------------------------
def _build_fused_params(params):
    w_lin = params["w_lin"].astype(jnp.float32)      # (23, 92)
    b_lin = params["b_lin"].astype(jnp.float32)      # (23,)
    b_dec = params["b_dec"].astype(jnp.float32)      # (4,)

    # Wf[o, s_idx*16 + c_glob] = sum_h w_lin[o, 23g+h] * W_g[c_loc, h, pad_g - s]
    wf = jnp.zeros((ALPHA, len(SHIFTS) * C_TOTAL), jnp.float32)
    bf = b_lin
    c0 = 0
    for g, (k, fn) in enumerate(zip(FILTER_WIDTHS, FILTER_CONFIG)):
        pad = _pad_for_width(k)
        wg = params["w_dec"][g].astype(jnp.float32)              # (fn, 23, k)
        wlin_g = w_lin[:, ALPHA * g: ALPHA * (g + 1)]            # (23, 23) [o, h]
        for si, s in enumerate(SHIFTS):
            j = pad - s
            if 0 <= j < k:
                blk = wlin_g @ wg[:, :, j].T                     # (23, fn)
                wf = wf.at[:, si * C_TOTAL + c0: si * C_TOTAL + c0 + fn].set(blk)
        bf = bf + b_dec[g] * jnp.sum(wlin_g, axis=1)
        c0 += fn

    # Re-index tap shift s into (q, r) = ((p+s)//3, (p+s)%3) per output phase p.
    w_stack = jnp.zeros((M_FUSED, K_FUSED), jnp.float32)
    for p in range(N_PHASE):
        for si, s in enumerate(SHIFTS):
            q, r = (p + s) // POOL, (p + s) % POOL
            row0 = p * ALPHA
            col0 = (QS.index(q) * POOL + r) * C_TOTAL
            w_stack = w_stack.at[row0:row0 + ALPHA, col0:col0 + C_TOTAL].set(
                wf[:, si * C_TOTAL:(si + 1) * C_TOTAL])
    b_stack = jnp.tile(bf, N_PHASE).reshape(M_FUSED, 1)
    return w_stack, b_stack


# --------------------------------------------------------------------------
# Wrapper
# --------------------------------------------------------------------------
def cnn_decoder_forward(x, unpool_indices, params, block_batch=32):
    """x, unpool_indices: (N, C_TOTAL, L_POOLED). Returns (N*84, 23) float32."""
    if block_batch % 32:
        raise ValueError("block_batch must be a multiple of 32 so B*28 is a "
                         "multiple of 128 (lane-dense blocks).")
    N = x.shape[0]
    n_blocks = pl.cdiv(N, block_batch)
    n_pad = n_blocks * block_batch
    lanes = block_batch * L_POOLED                   # 896 for B=32

    # ---- layout plumbing: channel-major, batch*length flattened into lanes.
    xt = jnp.transpose(x.astype(jnp.float32), (1, 0, 2))          # (16, N, 28)
    off = (unpool_indices.astype(jnp.int32)
           - POOL * jnp.arange(L_POOLED, dtype=jnp.int32))        # within-window offset
    offt = jnp.transpose(off, (1, 0, 2))                          # (16, N, 28)
    if n_pad != N:
        padding = ((0, 0), (0, n_pad - N), (0, 0))
        xt = jnp.pad(xt, padding)
        offt = jnp.pad(offt, padding)
    x_flat = xt.reshape(C_TOTAL, n_pad * L_POOLED)
    off_flat = offt.reshape(C_TOTAL, n_pad * L_POOLED)

    # per-sample segment-boundary masks for the +-1 pooled-domain shifts
    wcol = jnp.tile(jnp.arange(L_POOLED, dtype=jnp.int32), block_batch)
    masks = jnp.stack([(wcol != 0),                      # ok to read w-1
                       (wcol != L_POOLED - 1)]           # ok to read w+1
                      ).astype(jnp.float32)              # (2, lanes)

    w_stack, b_stack = _build_fused_params(params)

    out_t = pl.pallas_call(
        decoder_kernel,
        out_shape=jax.ShapeDtypeStruct((M_FUSED, n_pad * L_POOLED), jnp.float32),
        grid=(n_blocks,),
        in_specs=[
            pl.BlockSpec((C_TOTAL, lanes), lambda nb: (0, nb)),   # pooled values
            pl.BlockSpec((C_TOTAL, lanes), lambda nb: (0, nb)),   # unpool offsets
            pl.BlockSpec((2, lanes), lambda nb: (0, 0)),          # boundary masks
            pl.BlockSpec((M_FUSED, K_FUSED), lambda nb: (0, 0)),  # fused weights
            pl.BlockSpec((M_FUSED, 1), lambda nb: (0, 0)),        # fused bias
        ],
        out_specs=pl.BlockSpec((M_FUSED, lanes), lambda nb: (0, nb)),
        compiler_params=pltpu.CompilerParams(dimension_semantics=("parallel",)),
    )(x_flat, off_flat, masks, w_stack, b_stack)

    # out_t[p*23 + o, n*28 + w] == out[n*84 + 3*w + p, o]  -> undo phase interleave
    out = out_t.reshape(N_PHASE, ALPHA, n_pad, L_POOLED)
    out = jnp.transpose(out, (2, 3, 0, 1)).reshape(n_pad * EMIT_LEN, ALPHA)
    return out[:N * EMIT_LEN]


# --------------------------------------------------------------------------
# Pure-JAX reference (independent scatter / transposed-conv formulation)
# --------------------------------------------------------------------------
def reference_forward(x, idx, params):
    N = x.shape[0]
    n_ix = jnp.arange(N)[:, None, None]
    c_ix = jnp.arange(C_TOTAL)[None, :, None]
    unp = jnp.zeros((N, C_TOTAL, EMIT_LEN), jnp.float32).at[n_ix, c_ix, idx].set(x)

    outs, start = [], 0
    for g, (k, fn) in enumerate(zip(FILTER_WIDTHS, FILTER_CONFIG)):
        pad = _pad_for_width(k)
        Ug = unp[:, start:start + fn, :]
        Wg = params["w_dec"][g]                       # (fn, 23, k)
        full_len = EMIT_LEN + k - 1
        acc = jnp.zeros((N, ALPHA, full_len), jnp.float32)
        for j in range(k):
            acc = acc.at[:, :, j:j + EMIT_LEN].add(
                jnp.einsum('ch,ncw->nhw', Wg[:, :, j], Ug))
        acc = acc[:, :, pad:pad + EMIT_LEN] + params["b_dec"][g]
        outs.append(acc)
        start += fn
    D = jnp.concatenate(outs, axis=1)                 # (N, 92, 84)
    Dt = jnp.transpose(D, (0, 2, 1))                  # (N, 84, 92)
    out = Dt @ params["w_lin"].T + params["b_lin"]
    return out.reshape(-1, ALPHA)


if __name__ == "__main__":
    key = jax.random.PRNGKey(0)
    keys = jax.random.split(key, 8)
    N = 2

    # Simulate the encoder's MaxPool1d(3, return_indices=True) to get a
    # consistent (values, indices) pair for MaxUnpool1d.
    orig = jax.random.normal(keys[0], (N, C_TOTAL, EMIT_LEN), jnp.float32)
    windows = orig.reshape(N, C_TOTAL, L_POOLED, POOL)
    x_pooled = windows.max(-1)
    unpool_idx = (windows.argmax(-1).astype(jnp.int32)
                  + POOL * jnp.arange(L_POOLED, dtype=jnp.int32))

    # Deterministic synthetic parameters (shapes from the module's __init__).
    w_dec, b_dec = [], []
    for g, (k, fn) in enumerate(zip(FILTER_WIDTHS, FILTER_CONFIG)):
        # ConvTranspose2d weight (in=fn, out=1, kH=23, kW=k), out-channel squeezed.
        w_dec.append(0.1 * jax.random.normal(keys[1 + g], (fn, ALPHA, k), jnp.float32))
        b_dec.append(0.01 * (g + 1))
    b_dec = jnp.array(b_dec, jnp.float32)
    w_lin = 0.1 * jax.random.normal(keys[5], (ALPHA, N_GROUPS * ALPHA), jnp.float32)
    b_lin = 0.01 * jax.random.normal(keys[6], (ALPHA,), jnp.float32)
    params = {"w_dec": w_dec, "b_dec": b_dec, "w_lin": w_lin, "b_lin": b_lin}

    out = jax.block_until_ready(cnn_decoder_forward(x_pooled, unpool_idx, params))
    ref = reference_forward(x_pooled, unpool_idx, params)

    assert out.shape == (N * EMIT_LEN, ALPHA), out.shape
    err = float(jnp.max(jnp.abs(out - ref)))
    assert jnp.allclose(out, ref, atol=2e-4, rtol=2e-4), f"max abs err {err}"
    print("KERNEL_OK")
</pallas_src>

<mosaic_0001>
module attributes {stable_mosaic.version = 11 : i64} {
  func.func @decoder_kernel(%arg0: i32, %arg1: memref<16x896xf32, #tpu.memory_space<vmem>>, %arg2: memref<16x896xi32, #tpu.memory_space<vmem>>, %arg3: memref<2x896xf32, #tpu.memory_space<vmem>>, %arg4: memref<69x144xf32, #tpu.memory_space<vmem>>, %arg5: memref<69x1xf32, #tpu.memory_space<vmem>>, %arg6: memref<69x896xf32, #tpu.memory_space<vmem>>) attributes {dimension_semantics = [#tpu.dimension_semantics<parallel>], iteration_bounds = array<i64: 1>, scalar_prefetch = 0 : i64, scratch_operands = 0 : i64, tpu.core_type = #tpu.core_type<tc>, window_params = [{transform_indices = @transform_0, window_bounds = array<i64: 16, 896>}, {transform_indices = @transform_1, window_bounds = array<i64: 16, 896>}, {pipeline_mode = #tpu.pipeline_mode<synchronous>, transform_indices = @transform_2, window_bounds = array<i64: 2, 896>}, {pipeline_mode = #tpu.pipeline_mode<synchronous>, transform_indices = @transform_3, window_bounds = array<i64: 69, 144>}, {pipeline_mode = #tpu.pipeline_mode<synchronous>, transform_indices = @transform_4, window_bounds = array<i64: 69, 1>}, {transform_indices = @transform_5, window_bounds = array<i64: 69, 896>}]} {
    %c0 = arith.constant 0 : index
    %c0_0 = arith.constant 0 : index
    %0 = vector.load %arg1[%c0, %c0_0] : memref<16x896xf32, #tpu.memory_space<vmem>>, vector<16x896xf32>
    %c0_1 = arith.constant 0 : index
    %c0_2 = arith.constant 0 : index
    %1 = vector.load %arg2[%c0_1, %c0_2] : memref<16x896xi32, #tpu.memory_space<vmem>>, vector<16x896xi32>
    %c0_3 = arith.constant 0 : index
    %c0_4 = arith.constant 0 : index
    %2 = vector.load %arg3[%c0_3, %c0_4] : memref<2x896xf32, #tpu.memory_space<vmem>>, vector<1x896xf32>
    %c1 = arith.constant 1 : index
    %c0_5 = arith.constant 0 : index
    %3 = vector.load %arg3[%c1, %c0_5] : memref<2x896xf32, #tpu.memory_space<vmem>>, vector<1x896xf32>
    %c0_i32 = arith.constant 0 : i32
    %4 = vector.broadcast %c0_i32 : i32 to vector<16x896xi32>
    %5 = arith.cmpi eq, %1, %4 : vector<16x896xi32>
    %cst = arith.constant 0.000000e+00 : f32
    %6 = vector.broadcast %cst : f32 to vector<16x896xf32>
    %7 = arith.select %5, %0, %6 : vector<16x896xi1>, vector<16x896xf32>
    %c1_i32 = arith.constant 1 : i32
    %8 = vector.broadcast %c1_i32 : i32 to vector<16x896xi32>
    %9 = arith.cmpi eq, %1, %8 : vector<16x896xi32>
    %cst_6 = arith.constant 0.000000e+00 : f32
    %10 = vector.broadcast %cst_6 : f32 to vector<16x896xf32>
    %11 = arith.select %9, %0, %10 : vector<16x896xi1>, vector<16x896xf32>
    %c2_i32 = arith.constant 2 : i32
    %12 = vector.broadcast %c2_i32 : i32 to vector<16x896xi32>
    %13 = arith.cmpi eq, %1, %12 : vector<16x896xi32>
    %cst_7 = arith.constant 0.000000e+00 : f32
    %14 = vector.broadcast %cst_7 : f32 to vector<16x896xf32>
    %15 = arith.select %13, %0, %14 : vector<16x896xi1>, vector<16x896xf32>
    %cst_8 = arith.constant 0.000000e+00 : f32
    %16 = vector.broadcast %cst_8 : f32 to vector<16x1xf32>
    %17 = vector.extract_strided_slice %7 {offsets = [0, 0], sizes = [16, 895], strides = [1, 1]} : vector<16x896xf32> to vector<16x895xf32>
    %18 = tpu.concatenate %16, %17 in 1 : vector<16x1xf32>, vector<16x895xf32> -> vector<16x896xf32>
    %19 = vector.broadcast %2 : vector<1x896xf32> to vector<16x896xf32>
    %20 = arith.mulf %18, %19 : vector<16x896xf32>
    %21 = vector.extract_strided_slice %11 {offsets = [0, 0], sizes = [16, 895], strides = [1, 1]} : vector<16x896xf32> to vector<16x895xf32>
    %22 = tpu.concatenate %16, %21 in 1 : vector<16x1xf32>, vector<16x895xf32> -> vector<16x896xf32>
    %23 = vector.broadcast %2 : vector<1x896xf32> to vector<16x896xf32>
    %24 = arith.mulf %22, %23 : vector<16x896xf32>
    %25 = vector.extract_strided_slice %15 {offsets = [0, 0], sizes = [16, 895], strides = [1, 1]} : vector<16x896xf32> to vector<16x895xf32>
    %26 = tpu.concatenate %16, %25 in 1 : vector<16x1xf32>, vector<16x895xf32> -> vector<16x896xf32>
    %27 = vector.broadcast %2 : vector<1x896xf32> to vector<16x896xf32>
    %28 = arith.mulf %26, %27 : vector<16x896xf32>
    %29 = vector.extract_strided_slice %7 {offsets = [0, 1], sizes = [16, 895], strides = [1, 1]} : vector<16x896xf32> to vector<16x895xf32>
    %30 = tpu.concatenate %29, %16 in 1 : vector<16x895xf32>, vector<16x1xf32> -> vector<16x896xf32>
    %31 = vector.broadcast %3 : vector<1x896xf32> to vector<16x896xf32>
    %32 = arith.mulf %30, %31 : vector<16x896xf32>
    %33 = vector.extract_strided_slice %11 {offsets = [0, 1], sizes = [16, 895], strides = [1, 1]} : vector<16x896xf32> to vector<16x895xf32>
    %34 = tpu.concatenate %33, %16 in 1 : vector<16x895xf32>, vector<16x1xf32> -> vector<16x896xf32>
    %35 = vector.broadcast %3 : vector<1x896xf32> to vector<16x896xf32>
    %36 = arith.mulf %34, %35 : vector<16x896xf32>
    %37 = vector.extract_strided_slice %15 {offsets = [0, 1], sizes = [16, 895], strides = [1, 1]} : vector<16x896xf32> to vector<16x895xf32>
    %38 = tpu.concatenate %37, %16 in 1 : vector<16x895xf32>, vector<16x1xf32> -> vector<16x896xf32>
    %39 = vector.broadcast %3 : vector<1x896xf32> to vector<16x896xf32>
    %40 = arith.mulf %38, %39 : vector<16x896xf32>
    %41 = tpu.concatenate %20, %24, %28, %7, %11, %15, %32, %36, %40 in 0 : vector<16x896xf32>, vector<16x896xf32>, vector<16x896xf32>, vector<16x896xf32>, vector<16x896xf32>, vector<16x896xf32>, vector<16x896xf32>, vector<16x896xf32>, vector<16x896xf32> -> vector<144x896xf32>
    %c0_9 = arith.constant 0 : index
    %c0_10 = arith.constant 0 : index
    %42 = vector.load %arg4[%c0_9, %c0_10] : memref<69x144xf32, #tpu.memory_space<vmem>>, vector<69x144xf32>
    %cst_11 = arith.constant dense<0.000000e+00> : vector<69x896xf32>
    %43 = tpu.matmul %42, %41, %cst_11 {dimension_numbers = #tpu.dot_dimension_numbers<[1], [0], [0], [1], [0, 0, 1, 1], [], []>} : vector<69x144xf32>, vector<144x896xf32>, vector<69x896xf32> -> vector<69x896xf32>
    %c0_12 = arith.constant 0 : index
    %c0_13 = arith.constant 0 : index
    %44 = vector.load %arg5[%c0_12, %c0_13] : memref<69x1xf32, #tpu.memory_space<vmem>>, vector<69x1xf32>
    %45 = vector.broadcast %44 : vector<69x1xf32> to vector<69x896xf32>
    %46 = arith.addf %43, %45 : vector<69x896xf32>
    %c0_14 = arith.constant 0 : index
    %c0_15 = arith.constant 0 : index
    %47 = vector.load %arg6[%c0_14, %c0_15] : memref<69x896xf32, #tpu.memory_space<vmem>>, vector<69x896xf32>
    tpu.vector_store %arg6[%c0_14, %c0_15], %46 {strides = array<i32>} : memref<69x896xf32, #tpu.memory_space<vmem>>, vector<69x896xf32>,
    return
  }
  func.func @transform_0(%arg0: i32) -> (i32, i32) {
    %c0_i32 = arith.constant 0 : i32
    %c0_i32_0 = arith.constant 0 : i32
    return %c0_i32, %arg0 : i32, i32
  }
  func.func @transform_1(%arg0: i32) -> (i32, i32) {
    %c0_i32 = arith.constant 0 : i32
    %c0_i32_0 = arith.constant 0 : i32
    return %c0_i32, %arg0 : i32, i32
  }
  func.func @transform_2(%arg0: i32) -> (i32, i32) {
    %c0_i32 = arith.constant 0 : i32
    %c0_i32_0 = arith.constant 0 : i32
    %c0_i32_1 = arith.constant 0 : i32
    return %c0_i32, %c0_i32_0 : i32, i32
  }
  func.func @transform_3(%arg0: i32) -> (i32, i32) {
    %c0_i32 = arith.constant 0 : i32
    %c0_i32_0 = arith.constant 0 : i32
    %c0_i32_1 = arith.constant 0 : i32
    return %c0_i32, %c0_i32_0 : i32, i32
  }
  func.func @transform_4(%arg0: i32) -> (i32, i32) {
    %c0_i32 = arith.constant 0 : i32
    %c0_i32_0 = arith.constant 0 : i32
    %c0_i32_1 = arith.constant 0 : i32
    return %c0_i32, %c0_i32_0 : i32, i32
  }
  func.func @transform_5(%arg0: i32) -> (i32, i32) {
    %c0_i32 = arith.constant 0 : i32
    %c0_i32_0 = arith.constant 0 : i32
    return %c0_i32, %arg0 : i32, i32
  }
}

</mosaic_0001>

<llo_original>
// kernel: tpu_custom_call.1
$region0: #{tpu_custom_call.1}
  #allocation0 [shape = 'u32[]', space=smem, size = 0x4, offset = 0x4, fixed_abs, tag = 'smem constant byte address 0x4 - core index']
  #allocation1 [shape = 'u32[144,128]{1,0:T(1,128)}', space=vmem, size = 0x12000, scoped, tag = 'internal scratch']
  %s0 = inlined_call_operand.hbm [shape: f32[16,896], index: 0, kind: input, shape index: {}]
  %s1 = inlined_call_operand.hbm [shape: s32[16,896], index: 1, kind: input, shape index: {}]
  %s2 = inlined_call_operand.vmem [shape: f32[2,896], index: 2, kind: input, shape index: {}]
  %s3 = inlined_call_operand.hbm [shape: f32[69,144], index: 3, kind: input, shape index: {}]
  %s4 = inlined_call_operand.vmem [shape: f32[69,1], index: 4, kind: input, shape index: {}]
  %s5 = inlined_call_operand.hbm [shape: f32[69,896], index: 5, kind: output, shape index: {}]
  %s6 = sld [smem:[#allocation0]]
  $region42: #{tpu_custom_call.1} parent=0
    _
  %s8 = ssub.s32 1, %s6
  %s9 = scalar_select 0, %s8, %s6
  $region1: #{tpu_custom_call.1} parent=0
    #allocation2 [shape = 'u8[57344]{0}', space=vmem, size = 0xe000, scoped, tag = 'input window, operand 0, single buffered']
    #allocation3 [shape = 's32[1]{0}', space=sflag, size = 0x4, scoped, tag = 'scoped memory for tpu_custom_call.1']
    #allocation4 [shape = 's32[1]{0}', space=sflag, size = 0x4, scoped, tag = 'scoped memory for tpu_custom_call.1']
    #allocation5 [shape = 'u8[57344]{0}', space=vmem, size = 0xe000, scoped, tag = 'input window, operand 1, single buffered']
    #allocation6 [shape = 's32[1]{0}', space=sflag, size = 0x4, scoped, tag = 'scoped memory for tpu_custom_call.1']
    #allocation7 [shape = 'u8[73728]{0}', space=vmem, size = 0x12000, scoped, tag = 'input window, operand 3, single buffered']
    #allocation8 [shape = 'u8[258048]{0}', space=vmem, size = 0x3f000, scoped, tag = 'output window, operand 0, single buffered']
    %10 = vsyncpa [#allocation3], 0
    %11 = vsyncpa [#allocation6], 0
    %12 = vsyncpa [#allocation4], 0
    // Predicated region
    $region2: #{tpu_custom_call.1} parent=1 // pred_check
      _
    $region3: #{tpu_custom_call.1} parent=1 // pred_check_branch
      %14 = sbr.rel (0) target = $region5
    $region4: #{tpu_custom_call.1} parent=1 // pred_region
      %s16 = ssub.s32 1792, 1792
      %17 = vsyncadd [#allocation3], %s16
      %s18 = sshll.u32 [#allocation2], 4
      %s19 = int_to_ptr.vmem [resolvable:$true] %s18
      %24 = dma.hbm_to_vmem [thread:$0]  %s0, 1792, %s19, [#allocation3], 896, 896, 56
    $region5: #{tpu_custom_call.1} parent=1 // pred_fallthru
      _
    // Predicated region
    $region6: #{tpu_custom_call.1} parent=1 // pred_check
      _
    $region7: #{tpu_custom_call.1} parent=1 // pred_check_branch
      %26 = sbr.rel (0) target = $region9
    $region8: #{tpu_custom_call.1} parent=1 // pred_region
      %s28 = ssub.s32 1792, 1792
      %29 = vsyncadd [#allocation6], %s28
      %s30 = sshll.u32 [#allocation5], 4
      %s31 = int_to_ptr.vmem [resolvable:$true] %s30
      %36 = dma.hbm_to_vmem [thread:$0]  %s1, 1792, %s31, [#allocation6], 896, 896, 56
    $region9: #{tpu_custom_call.1} parent=1 // pred_fallthru
      _
    // Predicated region
    $region10: #{tpu_custom_call.1} parent=1 // pred_check
      _
    $region11: #{tpu_custom_call.1} parent=1 // pred_check_branch
      %38 = sbr.rel (0) target = $region13
    $region12: #{tpu_custom_call.1} parent=1 // pred_region
      _
    $region13: #{tpu_custom_call.1} parent=1 // pred_fallthru
      _
    // Predicated region
    $region14: #{tpu_custom_call.1} parent=1 // pred_check
      _
    $region15: #{tpu_custom_call.1} parent=1 // pred_check_branch
      %40 = sbr.rel (0) target = $region17
    $region16: #{tpu_custom_call.1} parent=1 // pred_region
      %s42 = ssub.s32 2304, 2304
      %43 = vsyncadd [#allocation6], %s42
      %s44 = sshll.u32 [#allocation7], 4
      %s45 = int_to_ptr.vmem [resolvable:$true] %s44
      %50 = dma.hbm_to_vmem [thread:$0]  %s3, 2304, %s45, [#allocation6], 256, 256, 16
    $region17: #{tpu_custom_call.1} parent=1 // pred_fallthru
      _
    // Predicated region
    $region18: #{tpu_custom_call.1} parent=1 // pred_check
      _
    $region19: #{tpu_custom_call.1} parent=1 // pred_check_branch
      %52 = sbr.rel (0) target = $region21
    $region20: #{tpu_custom_call.1} parent=1 // pred_region
      _
    $region21: #{tpu_custom_call.1} parent=1 // pred_fallthru
      _
    // Predicated region
    $region22: #{tpu_custom_call.1} parent=1 // pred_check
      _
    $region23: #{tpu_custom_call.1} parent=1 // pred_check_branch
      %54 = sbr.rel (0) target = $region25
    $region24: #{tpu_custom_call.1} parent=1 // pred_region
      %55 = dma.done [#allocation3], 1792
    $region25: #{tpu_custom_call.1} parent=1 // pred_fallthru
      _
    // Predicated region
    $region26: #{tpu_custom_call.1} parent=1 // pred_check
      _
    $region27: #{tpu_custom_call.1} parent=1 // pred_check_branch
      %57 = sbr.rel (0) target = $region29
    $region28: #{tpu_custom_call.1} parent=1 // pred_region
      %58 = dma.done [#allocation6], 1792
    $region29: #{tpu_custom_call.1} parent=1 // pred_fallthru
      _
    // Predicated region
    $region30: #{tpu_custom_call.1} parent=1 // pred_check
      _
    $region31: #{tpu_custom_call.1} parent=1 // pred_check_branch
      %60 = sbr.rel (0) target = $region33
    $region32: #{tpu_custom_call.1} parent=1 // pred_region
      %61 = dma.done [#allocation6], 2304
    $region33: #{tpu_custom_call.1} parent=1 // pred_fallthru
      _
    %v62 = vld [vmem:[#allocation2] sm:$0xff]
    %v63 = vld [vmem:[#allocation2 + $0x8] sm:$0xff]
    %v64 = vld [vmem:[#allocation2 + $0x10] sm:$0xff]
    %v65 = vld [vmem:[#allocation2 + $0x18] sm:$0xff]
    %v66 = vld [vmem:[#allocation2 + $0x20] sm:$0xff]
    %v67 = vld [vmem:[#allocation2 + $0x28] sm:$0xff]
    %v68 = vld [vmem:[#allocation2 + $0x30] sm:$0xff]
    %v69 = vld [vmem:[#allocation2 + $0x38] sm:$0xff]
    %v70 = vld [vmem:[#allocation2 + $0x40] sm:$0xff]
    %v71 = vld [vmem:[#allocation2 + $0x48] sm:$0xff]
    %v72 = vld [vmem:[#allocation2 + $0x50] sm:$0xff]
    %v73 = vld [vmem:[#allocation2 + $0x58] sm:$0xff]
    %v74 = vld [vmem:[#allocation2 + $0x60] sm:$0xff]
    %v75 = vld [vmem:[#allocation2 + $0x68] sm:$0xff]
    %v76 = vld [vmem:[#allocation5] sm:$0xff]
    %v77 = vld [vmem:[#allocation5 + $0x8] sm:$0xff]
    %v78 = vld [vmem:[#allocation5 + $0x10] sm:$0xff]
    %v79 = vld [vmem:[#allocation5 + $0x18] sm:$0xff]
    %v80 = vld [vmem:[#allocation5 + $0x20] sm:$0xff]
    %v81 = vld [vmem:[#allocation5 + $0x28] sm:$0xff]
    %v82 = vld [vmem:[#allocation5 + $0x30] sm:$0xff]
    %v83 = vld [vmem:[#allocation5 + $0x38] sm:$0xff]
    %v84 = vld [vmem:[#allocation5 + $0x40] sm:$0xff]
    %v85 = vld [vmem:[#allocation5 + $0x48] sm:$0xff]
    %v86 = vld [vmem:[#allocation5 + $0x50] sm:$0xff]
    %v87 = vld [vmem:[#allocation5 + $0x58] sm:$0xff]
    %v88 = vld [vmem:[#allocation5 + $0x60] sm:$0xff]
    %v89 = vld [vmem:[#allocation5 + $0x68] sm:$0xff]
    %v90 = vld [vmem:[%s2] ss:$2 sm:$0xff]
    %s91 = scalar_lea.vmem %s2, 1
    %v92 = vld [vmem:[%s91] ss:$2 sm:$0xff]
    %vm93 = vcmp.eq.s32.totalorder %v76, 0
    %vm94 = vcmp.eq.s32.totalorder %v77, 0
    %vm95 = vcmp.eq.s32.totalorder %v78, 0
    %vm96 = vcmp.eq.s32.totalorder %v79, 0
    %vm97 = vcmp.eq.s32.totalorder %v80, 0
    %vm98 = vcmp.eq.s32.totalorder %v81, 0
    %vm99 = vcmp.eq.s32.totalorder %v82, 0
    %vm100 = vcmp.eq.s32.totalorder %v83, 0
    %vm101 = vcmp.eq.s32.totalorder %v84, 0
    %vm102 = vcmp.eq.s32.totalorder %v85, 0
    %vm103 = vcmp.eq.s32.totalorder %v86, 0
    %vm104 = vcmp.eq.s32.totalorder %v87, 0
    %vm105 = vcmp.eq.s32.totalorder %v88, 0
    %vm106 = vcmp.eq.s32.totalorder %v89, 0
    %v107 = vsel %vm93, %v62, 0.0
    %v108 = vsel %vm94, %v63, 0.0
    %v109 = vsel %vm95, %v64, 0.0
    %v110 = vsel %vm96, %v65, 0.0
    %v111 = vsel %vm97, %v66, 0.0
    %v112 = vsel %vm98, %v67, 0.0
    %v113 = vsel %vm99, %v68, 0.0
    %v114 = vsel %vm100, %v69, 0.0
    %v115 = vsel %vm101, %v70, 0.0
    %v116 = vsel %vm102, %v71, 0.0
    %v117 = vsel %vm103, %v72, 0.0
    %v118 = vsel %vm104, %v73, 0.0
    %v119 = vsel %vm105, %v74, 0.0
    %v120 = vsel %vm106, %v75, 0.0
    %vm121 = vcmp.eq.s32.totalorder %v76, 1
    %vm122 = vcmp.eq.s32.totalorder %v77, 1
    %vm123 = vcmp.eq.s32.totalorder %v78, 1
    %vm124 = vcmp.eq.s32.totalorder %v79, 1
    %vm125 = vcmp.eq.s32.totalorder %v80, 1
    %vm126 = vcmp.eq.s32.totalorder %v81, 1
    %vm127 = vcmp.eq.s32.totalorder %v82, 1
    %vm128 = vcmp.eq.s32.totalorder %v83, 1
    %vm129 = vcmp.eq.s32.totalorder %v84, 1
    %vm130 = vcmp.eq.s32.totalorder %v85, 1
    %vm131 = vcmp.eq.s32.totalorder %v86, 1
    %vm132 = vcmp.eq.s32.totalorder %v87, 1
    %vm133 = vcmp.eq.s32.totalorder %v88, 1
    %vm134 = vcmp.eq.s32.totalorder %v89, 1
    %v135 = vsel %vm121, %v62, 0.0
    %v136 = vsel %vm122, %v63, 0.0
    %v137 = vsel %vm123, %v64, 0.0
    %v138 = vsel %vm124, %v65, 0.0
    %v139 = vsel %vm125, %v66, 0.0
    %v140 = vsel %vm126, %v67, 0.0
    %v141 = vsel %vm127, %v68, 0.0
    %v142 = vsel %vm128, %v69, 0.0
    %v143 = vsel %vm129, %v70, 0.0
    %v144 = vsel %vm130, %v71, 0.0
    %v145 = vsel %vm131, %v72, 0.0
    %v146 = vsel %vm132, %v73, 0.0
    %v147 = vsel %vm133, %v74, 0.0
    %v148 = vsel %vm134, %v75, 0.0
    %vm149 = vcmp.eq.s32.totalorder %v76, 2
    %vm150 = vcmp.eq.s32.totalorder %v77, 2
    %vm151 = vcmp.eq.s32.totalorder %v78, 2
    %vm152 = vcmp.eq.s32.totalorder %v79, 2
    %vm153 = vcmp.eq.s32.totalorder %v80, 2
    %vm154 = vcmp.eq.s32.totalorder %v81, 2
    %vm155 = vcmp.eq.s32.totalorder %v82, 2
    %vm156 = vcmp.eq.s32.totalorder %v83, 2
    %vm157 = vcmp.eq.s32.totalorder %v84, 2
    %vm158 = vcmp.eq.s32.totalorder %v85, 2
    %vm159 = vcmp.eq.s32.totalorder %v86, 2
    %vm160 = vcmp.eq.s32.totalorder %v87, 2
    %vm161 = vcmp.eq.s32.totalorder %v88, 2
    %vm162 = vcmp.eq.s32.totalorder %v89, 2
    %v163 = vsel %vm149, %v62, 0.0
    %v164 = vsel %vm150, %v63, 0.0
    %v165 = vsel %vm151, %v64, 0.0
    %v166 = vsel %vm152, %v65, 0.0
    %v167 = vsel %vm153, %v66, 0.0
    %v168 = vsel %vm154, %v67, 0.0
    %v169 = vsel %vm155, %v68, 0.0
    %v170 = vsel %vm156, %v69, 0.0
    %v171 = vsel %vm157, %v70, 0.0
    %v172 = vsel %vm158, %v71, 0.0
    %v173 = vsel %vm159, %v72, 0.0
    %v174 = vsel %vm160, %v73, 0.0
    %v175 = vsel %vm161, %v74, 0.0
    %v176 = vsel %vm162, %v75, 0.0
    %191 = vrot.lane.b32.xlu0 %v107, 1
    %v192 = vpop.permute.xlu0 %191
    %193 = vrot.lane.b32.xlu0 %v108, 1
    %v194 = vpop.permute.xlu0 %193
    %195 = vrot.lane.b32.xlu0 %v109, 1
    %v196 = vpop.permute.xlu0 %195
    %197 = vrot.lane.b32.xlu0 %v110, 1
    %v198 = vpop.permute.xlu0 %197
    %199 = vrot.lane.b32.xlu0 %v111, 1
    %v200 = vpop.permute.xlu0 %199
    %201 = vrot.lane.b32.xlu0 %v112, 1
    %v202 = vpop.permute.xlu0 %201
    %203 = vrot.lane.b32.xlu0 %v113, 1
    %v204 = vpop.permute.xlu0 %203
    %205 = vrot.lane.b32.xlu0 %v114, 1
    %v206 = vpop.permute.xlu0 %205
    %207 = vrot.lane.b32.xlu0 %v115, 1
    %v208 = vpop.permute.xlu0 %207
    %209 = vrot.lane.b32.xlu0 %v116, 1
    %v210 = vpop.permute.xlu0 %209
    %211 = vrot.lane.b32.xlu0 %v117, 1
    %v212 = vpop.permute.xlu0 %211
    %213 = vrot.lane.b32.xlu0 %v118, 1
    %v214 = vpop.permute.xlu0 %213
    %215 = vrot.lane.b32.xlu0 %v119, 1
    %v216 = vpop.permute.xlu0 %215
    %217 = vrot.lane.b32.xlu0 %v120, 1
    %v218 = vpop.permute.xlu0 %217
    %vm219 = vcmask 7168
    %v220 = vsel %vm219, %v192, %v194
    %v221 = vsel %vm219, %v194, %v196
    %v222 = vsel %vm219, %v196, %v198
    %v223 = vsel %vm219, %v198, %v200
    %v224 = vsel %vm219, %v200, %v202
    %v225 = vsel %vm219, %v202, %v204
    %v226 = vsel %vm219, %v206, %v208
    %v227 = vsel %vm219, %v208, %v210
    %v228 = vsel %vm219, %v210, %v212
    %v229 = vsel %vm219, %v212, %v214
    %v230 = vsel %vm219, %v214, %v216
    %v231 = vsel %vm219, %v216, %v218
    %v246 = vsel %vm219, 0.0, %v192
    %v247 = vsel %vm219, 0.0, %v206
    %v249 = vlaneseq
    %v250 = vshrl.u32 %v249, 7
    %v251 = vsub.s32 0, %v250
    %v252 = vrot.slane %v90, %v251
    %v253 = vlaneseq
    %v254 = vshrl.u32 %v253, 7
    %v255 = vsub.s32 1, %v254
    %v256 = vrot.slane %v90, %v255
    %v257 = vlaneseq
    %v258 = vshrl.u32 %v257, 7
    %v259 = vsub.s32 2, %v258
    %v260 = vrot.slane %v90, %v259
    %v261 = vlaneseq
    %v262 = vshrl.u32 %v261, 7
    %v263 = vsub.s32 3, %v262
    %v264 = vrot.slane %v90, %v263
    %v265 = vlaneseq
    %v266 = vshrl.u32 %v265, 7
    %v267 = vsub.s32 4, %v266
    %v268 = vrot.slane %v90, %v267
    %v269 = vlaneseq
    %v270 = vshrl.u32 %v269, 7
    %v271 = vsub.s32 5, %v270
    %v272 = vrot.slane %v90, %v271
    %v273 = vlaneseq
    %v274 = vshrl.u32 %v273, 7
    %v275 = vsub.s32 6, %v274
    %v276 = vrot.slane %v90, %v275
    %v284 = vmul.f32 %v246, %v252
    %v285 = vmul.f32 %v220, %v256
    %v286 = vmul.f32 %v221, %v260
    %v287 = vmul.f32 %v222, %v264
    %v288 = vmul.f32 %v223, %v268
    %v289 = vmul.f32 %v224, %v272
    %v290 = vmul.f32 %v225, %v276
    %v291 = vmul.f32 %v247, %v252
    %v292 = vmul.f32 %v226, %v256
    %v293 = vmul.f32 %v227, %v260
    %v294 = vmul.f32 %v228, %v264
    %v295 = vmul.f32 %v229, %v268
    %v296 = vmul.f32 %v230, %v272
    %v297 = vmul.f32 %v231, %v276
    %312 = vrot.lane.b32.xlu0 %v135, 1
    %v313 = vpop.permute.xlu0 %312
    %314 = vrot.lane.b32.xlu0 %v136, 1
    %v315 = vpop.permute.xlu0 %314
    %316 = vrot.lane.b32.xlu0 %v137, 1
    %v317 = vpop.permute.xlu0 %316
    %318 = vrot.lane.b32.xlu0 %v138, 1
    %v319 = vpop.permute.xlu0 %318
    %320 = vrot.lane.b32.xlu0 %v139, 1
    %v321 = vpop.permute.xlu0 %320
    %322 = vrot.lane.b32.xlu0 %v140, 1
    %v323 = vpop.permute.xlu0 %322
    %324 = vrot.lane.b32.xlu0 %v141, 1
    %v325 = vpop.permute.xlu0 %324
    %326 = vrot.lane.b32.xlu0 %v142, 1
    %v327 = vpop.permute.xlu0 %326
    %328 = vrot.lane.b32.xlu0 %v143, 1
    %v329 = vpop.permute.xlu0 %328
    %330 = vrot.lane.b32.xlu0 %v144, 1
    %v331 = vpop.permute.xlu0 %330
    %332 = vrot.lane.b32.xlu0 %v145, 1
    %v333 = vpop.permute.xlu0 %332
    %334 = vrot.lane.b32.xlu0 %v146, 1
    %v335 = vpop.permute.xlu0 %334
    %336 = vrot.lane.b32.xlu0 %v147, 1
    %v337 = vpop.permute.xlu0 %336
    %338 = vrot.lane.b32.xlu0 %v148, 1
    %v339 = vpop.permute.xlu0 %338
    %v340 = vsel %vm219, %v313, %v315
    %v341 = vsel %vm219, %v315, %v317
    %v342 = vsel %vm219, %v317, %v319
    %v343 = vsel %vm219, %v319, %v321
    %v344 = vsel %vm219, %v321, %v323
    %v345 = vsel %vm219, %v323, %v325
    %v346 = vsel %vm219, %v327, %v329
    %v347 = vsel %vm219, %v329, %v331
    %v348 = vsel %vm219, %v331, %v333
    %v349 = vsel %vm219, %v333, %v335
    %v350 = vsel %vm219, %v335, %v337
    %v351 = vsel %vm219, %v337, %v339
    %v366 = vsel %vm219, 0.0, %v313
    %v367 = vsel %vm219, 0.0, %v327
    %v368 = vmul.f32 %v366, %v252
    %v369 = vmul.f32 %v340, %v256
    %v370 = vmul.f32 %v341, %v260
    %v371 = vmul.f32 %v342, %v264
    %v372 = vmul.f32 %v343, %v268
    %v373 = vmul.f32 %v344, %v272
    %v374 = vmul.f32 %v345, %v276
    %v375 = vmul.f32 %v367, %v252
    %v376 = vmul.f32 %v346, %v256
    %v377 = vmul.f32 %v347, %v260
    %v378 = vmul.f32 %v348, %v264
    %v379 = vmul.f32 %v349, %v268
    %v380 = vmul.f32 %v350, %v272
    %v381 = vmul.f32 %v351, %v276
    %396 = vrot.lane.b32.xlu0 %v163, 1
    %v397 = vpop.permute.xlu0 %396
    %398 = vrot.lane.b32.xlu0 %v164, 1
    %v399 = vpop.permute.xlu0 %398
    %400 = vrot.lane.b32.xlu0 %v165, 1
    %v401 = vpop.permute.xlu0 %400
    %402 = vrot.lane.b32.xlu0 %v166, 1
    %v403 = vpop.permute.xlu0 %402
    %404 = vrot.lane.b32.xlu0 %v167, 1
    %v405 = vpop.permute.xlu0 %404
    %406 = vrot.lane.b32.xlu0 %v168, 1
    %v407 = vpop.permute.xlu0 %406
    %408 = vrot.lane.b32.xlu0 %v169, 1
    %v409 = vpop.permute.xlu0 %408
    %410 = vrot.lane.b32.xlu0 %v170, 1
    %v411 = vpop.permute.xlu0 %410
    %412 = vrot.lane.b32.xlu0 %v171, 1
    %v413 = vpop.permute.xlu0 %412
    %414 = vrot.lane.b32.xlu0 %v172, 1
    %v415 = vpop.permute.xlu0 %414
    %416 = vrot.lane.b32.xlu0 %v173, 1
    %v417 = vpop.permute.xlu0 %416
    %418 = vrot.lane.b32.xlu0 %v174, 1
    %v419 = vpop.permute.xlu0 %418
    %420 = vrot.lane.b32.xlu0 %v175, 1
    %v421 = vpop.permute.xlu0 %420
    %422 = vrot.lane.b32.xlu0 %v176, 1
    %v423 = vpop.permute.xlu0 %422
    %v424 = vsel %vm219, %v397, %v399
    %v425 = vsel %vm219, %v399, %v401
    %v426 = vsel %vm219, %v401, %v403
    %v427 = vsel %vm219, %v403, %v405
    %v428 = vsel %vm219, %v405, %v407
    %v429 = vsel %vm219, %v407, %v409
    %v430 = vsel %vm219, %v411, %v413
    %v431 = vsel %vm219, %v413, %v415
    %v432 = vsel %vm219, %v415, %v417
    %v433 = vsel %vm219, %v417, %v419
    %v434 = vsel %vm219, %v419, %v421
    %v435 = vsel %vm219, %v421, %v423
    %v450 = vsel %vm219, 0.0, %v397
    %v451 = vsel %vm219, 0.0, %v411
    %v452 = vmul.f32 %v450, %v252
    %v453 = vmul.f32 %v424, %v256
    %v454 = vmul.f32 %v425, %v260
    %v455 = vmul.f32 %v426, %v264
    %v456 = vmul.f32 %v427, %v268
    %v457 = vmul.f32 %v428, %v272
    %v458 = vmul.f32 %v429, %v276
    %v459 = vmul.f32 %v451, %v252
    %v460 = vmul.f32 %v430, %v256
    %v461 = vmul.f32 %v431, %v260
    %v462 = vmul.f32 %v432, %v264
    %v463 = vmul.f32 %v433, %v268
    %v464 = vmul.f32 %v434, %v272
    %v465 = vmul.f32 %v435, %v276
    %466 = vrot.lane.b32.xlu0 %v107, 127
    %v467 = vpop.permute.xlu0 %466
    %468 = vrot.lane.b32.xlu0 %v108, 127
    %v469 = vpop.permute.xlu0 %468
    %470 = vrot.lane.b32.xlu0 %v109, 127
    %v471 = vpop.permute.xlu0 %470
    %472 = vrot.lane.b32.xlu0 %v110, 127
    %v473 = vpop.permute.xlu0 %472
    %474 = vrot.lane.b32.xlu0 %v111, 127
    %v475 = vpop.permute.xlu0 %474
    %476 = vrot.lane.b32.xlu0 %v112, 127
    %v477 = vpop.permute.xlu0 %476
    %478 = vrot.lane.b32.xlu0 %v113, 127
    %v479 = vpop.permute.xlu0 %478
    %480 = vrot.lane.b32.xlu0 %v114, 127
    %v481 = vpop.permute.xlu0 %480
    %482 = vrot.lane.b32.xlu0 %v115, 127
    %v483 = vpop.permute.xlu0 %482
    %484 = vrot.lane.b32.xlu0 %v116, 127
    %v485 = vpop.permute.xlu0 %484
    %486 = vrot.lane.b32.xlu0 %v117, 127
    %v487 = vpop.permute.xlu0 %486
    %488 = vrot.lane.b32.xlu0 %v118, 127
    %v489 = vpop.permute.xlu0 %488
    %490 = vrot.lane.b32.xlu0 %v119, 127
    %v491 = vpop.permute.xlu0 %490
    %492 = vrot.lane.b32.xlu0 %v120, 127
    %v493 = vpop.permute.xlu0 %492
    %vm494 = vcmask 1039360
    %v495 = vsel %vm494, %v467, %v469
    %v496 = vsel %vm494, %v469, %v471
    %v497 = vsel %vm494, %v471, %v473
    %v498 = vsel %vm494, %v473, %v475
    %v499 = vsel %vm494, %v475, %v477
    %v500 = vsel %vm494, %v477, %v479
    %v501 = vsel %vm494, %v481, %v483
    %v502 = vsel %vm494, %v483, %v485
    %v503 = vsel %vm494, %v485, %v487
    %v504 = vsel %vm494, %v487, %v489
    %v505 = vsel %vm494, %v489, %v491
    %v506 = vsel %vm494, %v491, %v493
    %v521 = vsel %vm494, %v479, 0.0
    %v522 = vsel %vm494, %v493, 0.0
    %v524 = vlaneseq
    %v525 = vshrl.u32 %v524, 7
    %v526 = vsub.s32 0, %v525
    %v527 = vrot.slane %v92, %v526
    %v528 = vlaneseq
    %v529 = vshrl.u32 %v528, 7
    %v530 = vsub.s32 1, %v529
    %v531 = vrot.slane %v92, %v530
    %v532 = vlaneseq
    %v533 = vshrl.u32 %v532, 7
    %v534 = vsub.s32 2, %v533
    %v535 = vrot.slane %v92, %v534
    %v536 = vlaneseq
    %v537 = vshrl.u32 %v536, 7
    %v538 = vsub.s32 3, %v537
    %v539 = vrot.slane %v92, %v538
    %v540 = vlaneseq
    %v541 = vshrl.u32 %v540, 7
    %v542 = vsub.s32 4, %v541
    %v543 = vrot.slane %v92, %v542
    %v544 = vlaneseq
    %v545 = vshrl.u32 %v544, 7
    %v546 = vsub.s32 5, %v545
    %v547 = vrot.slane %v92, %v546
    %v548 = vlaneseq
    %v549 = vshrl.u32 %v548, 7
    %v550 = vsub.s32 6, %v549
    %v551 = vrot.slane %v92, %v550
    %v559 = vmul.f32 %v495, %v527
    %v560 = vmul.f32 %v496, %v531
    %v561 = vmul.f32 %v497, %v535
    %v562 = vmul.f32 %v498, %v539
    %v563 = vmul.f32 %v499, %v543
    %v564 = vmul.f32 %v500, %v547
    %v565 = vmul.f32 %v521, %v551
    %v566 = vmul.f32 %v501, %v527
    %v567 = vmul.f32 %v502, %v531
    %v568 = vmul.f32 %v503, %v535
    %v569 = vmul.f32 %v504, %v539
    %v570 = vmul.f32 %v505, %v543
    %v571 = vmul.f32 %v506, %v547
    %v572 = vmul.f32 %v522, %v551
    %573 = vrot.lane.b32.xlu0 %v135, 127
    %v574 = vpop.permute.xlu0 %573
    %575 = vrot.lane.b32.xlu0 %v136, 127
    %v576 = vpop.permute.xlu0 %575
    %577 = vrot.lane.b32.xlu0 %v137, 127
    %v578 = vpop.permute.xlu0 %577
    %579 = vrot.lane.b32.xlu0 %v138, 127
    %v580 = vpop.permute.xlu0 %579
    %581 = vrot.lane.b32.xlu0 %v139, 127
    %v582 = vpop.permute.xlu0 %581
    %583 = vrot.lane.b32.xlu0 %v140, 127
    %v584 = vpop.permute.xlu0 %583
    %585 = vrot.lane.b32.xlu0 %v141, 127
    %v586 = vpop.permute.xlu0 %585
    %587 = vrot.lane.b32.xlu0 %v142, 127
    %v588 = vpop.permute.xlu0 %587
    %589 = vrot.lane.b32.xlu0 %v143, 127
    %v590 = vpop.permute.xlu0 %589
    %591 = vrot.lane.b32.xlu0 %v144, 127
    %v592 = vpop.permute.xlu0 %591
    %593 = vrot.lane.b32.xlu0 %v145, 127
    %v594 = vpop.permute.xlu0 %593
    %595 = vrot.lane.b32.xlu0 %v146, 127
    %v596 = vpop.permute.xlu0 %595
    %597 = vrot.lane.b32.xlu0 %v147, 127
    %v598 = vpop.permute.xlu0 %597
    %599 = vrot.lane.b32.xlu0 %v148, 127
    %v600 = vpop.permute.xlu0 %599
    %v601 = vsel %vm494, %v574, %v576
    %v602 = vsel %vm494, %v576, %v578
    %v603 = vsel %vm494, %v578, %v580
    %v604 = vsel %vm494, %v580, %v582
    %v605 = vsel %vm494, %v582, %v584
    %v606 = vsel %vm494, %v584, %v586
    %v607 = vsel %vm494, %v588, %v590
    %v608 = vsel %vm494, %v590, %v592
    %v609 = vsel %vm494, %v592, %v594
    %v610 = vsel %vm494, %v594, %v596
    %v611 = vsel %vm494, %v596, %v598
    %v612 = vsel %vm494, %v598, %v600
    %v627 = vsel %vm494, %v586, 0.0
    %v628 = vsel %vm494, %v600, 0.0
    %v629 = vmul.f32 %v601, %v527
    %v630 = vmul.f32 %v602, %v531
    %v631 = vmul.f32 %v603, %v535
    %v632 = vmul.f32 %v604, %v539
    %v633 = vmul.f32 %v605, %v543
    %v634 = vmul.f32 %v606, %v547
    %v635 = vmul.f32 %v627, %v551
    %v636 = vmul.f32 %v607, %v527
    %v637 = vmul.f32 %v608, %v531
    %v638 = vmul.f32 %v609, %v535
    %v639 = vmul.f32 %v610, %v539
    %v640 = vmul.f32 %v611, %v543
    %v641 = vmul.f32 %v612, %v547
    %v642 = vmul.f32 %v628, %v551
    %643 = vrot.lane.b32.xlu0 %v163, 127
    %v644 = vpop.permute.xlu0 %643
    %645 = vrot.lane.b32.xlu0 %v164, 127
    %v646 = vpop.permute.xlu0 %645
    %647 = vrot.lane.b32.xlu0 %v165, 127
    %v648 = vpop.permute.xlu0 %647
    %649 = vrot.lane.b32.xlu0 %v166, 127
    %v650 = vpop.permute.xlu0 %649
    %651 = vrot.lane.b32.xlu0 %v167, 127
    %v652 = vpop.permute.xlu0 %651
    %653 = vrot.lane.b32.xlu0 %v168, 127
    %v654 = vpop.permute.xlu0 %653
    %655 = vrot.lane.b32.xlu0 %v169, 127
    %v656 = vpop.permute.xlu0 %655
    %657 = vrot.lane.b32.xlu0 %v170, 127
    %v658 = vpop.permute.xlu0 %657
    %659 = vrot.lane.b32.xlu0 %v171, 127
    %v660 = vpop.permute.xlu0 %659
    %661 = vrot.lane.b32.xlu0 %v172, 127
    %v662 = vpop.permute.xlu0 %661
    %663 = vrot.lane.b32.xlu0 %v173, 127
    %v664 = vpop.permute.xlu0 %663
    %665 = vrot.lane.b32.xlu0 %v174, 127
    %v666 = vpop.permute.xlu0 %665
    %667 = vrot.lane.b32.xlu0 %v175, 127
    %v668 = vpop.permute.xlu0 %667
    %669 = vrot.lane.b32.xlu0 %v176, 127
    %v670 = vpop.permute.xlu0 %669
    %v671 = vsel %vm494, %v644, %v646
    %v672 = vsel %vm494, %v646, %v648
    %v673 = vsel %vm494, %v648, %v650
    %v674 = vsel %vm494, %v650, %v652
    %v675 = vsel %vm494, %v652, %v654
    %v676 = vsel %vm494, %v654, %v656
    %v677 = vsel %vm494, %v658, %v660
    %v678 = vsel %vm494, %v660, %v662
    %v679 = vsel %vm494, %v662, %v664
    %v680 = vsel %vm494, %v664, %v666
    %v681 = vsel %vm494, %v666, %v668
    %v682 = vsel %vm494, %v668, %v670
    %v697 = vsel %vm494, %v656, 0.0
    %v698 = vsel %vm494, %v670, 0.0
    %v699 = vmul.f32 %v671, %v527
    %v700 = vmul.f32 %v672, %v531
    %v701 = vmul.f32 %v673, %v535
    %v702 = vmul.f32 %v674, %v539
    %v703 = vmul.f32 %v675, %v543
    %v704 = vmul.f32 %v676, %v547
    %v705 = vmul.f32 %v697, %v551
    %v706 = vmul.f32 %v677, %v527
    %v707 = vmul.f32 %v678, %v531
    %v708 = vmul.f32 %v679, %v535
    %v709 = vmul.f32 %v680, %v539
    %v710 = vmul.f32 %v681, %v543
    %v711 = vmul.f32 %v682, %v547
    %v712 = vmul.f32 %v698, %v551
    %v713 = vld [vmem:[#allocation7] sm:$0xff]
    %v714 = vld [vmem:[#allocation7 + $0x8] sm:$0xff]
    %v715 = vld [vmem:[#allocation7 + $0x10] sm:$0xff]
    %v716 = vld [vmem:[#allocation7 + $0x18] sm:$0xff]
    %v717 = vld [vmem:[#allocation7 + $0x20] sm:$0xff]
    %v718 = vld [vmem:[#allocation7 + $0x28] sm:$0xff]
    %v719 = vld [vmem:[#allocation7 + $0x30] sm:$0xff]
    %v720 = vld [vmem:[#allocation7 + $0x38] sm:$0xff]
    %v721 = vld [vmem:[#allocation7 + $0x40] sm:$0xff]
    %v722 = vld [vmem:[#allocation7 + $0x48] sm:$0xff]
    %v723 = vld [vmem:[#allocation7 + $0x50] sm:$0xff]
    %v724 = vld [vmem:[#allocation7 + $0x58] sm:$0xff]
    %v725 = vld [vmem:[#allocation7 + $0x60] sm:$0xff]
    %v726 = vld [vmem:[#allocation7 + $0x68] sm:$0xff]
    %v727 = vld [vmem:[#allocation7 + $0x70] sm:$0xff]
    %v728 = vld [vmem:[#allocation7 + $0x78] sm:$0xff]
    %v729 = vld [vmem:[#allocation7 + $0x80] sm:$0x1f]
    %v730 = vld [vmem:[#allocation7 + $0x88] sm:$0x1f]
    %v731 = vld [vmem:[%s4] sm:$0xff]
    %v732 = vld [vmem:[%s4 + $0x8] sm:$0xff]
    %v733 = vld [vmem:[%s4 + $0x10] sm:$0xff]
    %v734 = vld [vmem:[%s4 + $0x18] sm:$0xff]
    %v735 = vld [vmem:[%s4 + $0x20] sm:$0xff]
    %v736 = vld [vmem:[%s4 + $0x28] sm:$0xff]
    %v737 = vld [vmem:[%s4 + $0x30] sm:$0xff]
    %v738 = vld [vmem:[%s4 + $0x38] sm:$0xff]
    %v739 = vld [vmem:[%s4 + $0x40] sm:$0x1f]
    %741 = vset.pattern.permute.xlu0 0
    %742 = vperm.xlu0 %741, %v731
    %v743 = vpop.permute.xlu0 %742
    %746 = vset.pattern.permute.xlu0 0
    %747 = vperm.xlu0 %746, %v732
    %v748 = vpop.permute.xlu0 %747
    %751 = vset.pattern.permute.xlu0 0
    %752 = vperm.xlu0 %751, %v733
    %v753 = vpop.permute.xlu0 %752
    %756 = vset.pattern.permute.xlu0 0
    %757 = vperm.xlu0 %756, %v734
    %v758 = vpop.permute.xlu0 %757
    %761 = vset.pattern.permute.xlu0 0
    %762 = vperm.xlu0 %761, %v735
    %v763 = vpop.permute.xlu0 %762
    %766 = vset.pattern.permute.xlu0 0
    %767 = vperm.xlu0 %766, %v736
    %v768 = vpop.permute.xlu0 %767
    %771 = vset.pattern.permute.xlu0 0
    %772 = vperm.xlu0 %771, %v737
    %v773 = vpop.permute.xlu0 %772
    %776 = vset.pattern.permute.xlu0 0
    %777 = vperm.xlu0 %776, %v738
    %v778 = vpop.permute.xlu0 %777
    %781 = vset.pattern.permute.xlu0 0
    %782 = vperm.xlu0 %781, %v739
    %v783 = vpop.permute.xlu0 %782
    %vm785 = vcmask 130048
    %v787 = vsel %vm785, %v714, 0
    %v790 = vsel %vm785, %v716, 0
    %v793 = vsel %vm785, %v718, 0
    %v796 = vsel %vm785, %v720, 0
    %v799 = vsel %vm785, %v722, 0
    %v802 = vsel %vm785, %v724, 0
    %v805 = vsel %vm785, %v726, 0
    %v808 = vsel %vm785, %v728, 0
    %v811 = vsel %vm785, %v730, 0
    %813 = vmatprep.subr.mxu0 %v285
    %814 = vmatpush1.msra.mxu0 %v284
    %815 = vmatprep.subr.mxu0 %v292
    %816 = vmatpush1.msra.mxu0 %v291
    %817 = vmatprep.subr.mxu0 %v369
    %818 = vmatpush1.msra.mxu0 %v368
    %819 = vmatprep.subr.mxu0 %v376
    %820 = vmatpush1.msra.mxu0 %v375
    %821 = vmatprep.subr.mxu0 %v453
    %822 = vmatpush1.msra.mxu0 %v452
    %823 = vmatprep.subr.mxu0 %v460
    %824 = vmatpush1.msra.mxu0 %v459
    %825 = vmatprep.subr.mxu0 %v108
    %826 = vmatpush1.msra.mxu0 %v107
    %827 = vmatprep.subr.mxu0 %v115
    %828 = vmatpush1.msra.mxu0 %v114
    %829 = vmatprep.subr.mxu0 %v136
    %830 = vmatpush1.msra.mxu0 %v135
    %831 = vmatprep.subr.mxu0 %v143
    %832 = vmatpush1.msra.mxu0 %v142
    %833 = vmatprep.subr.mxu0 %v164
    %834 = vmatpush1.msra.mxu0 %v163
    %835 = vmatprep.subr.mxu0 %v171
    %836 = vmatpush1.msra.mxu0 %v170
    %837 = vmatprep.subr.mxu0 %v560
    %838 = vmatpush1.msra.mxu0 %v559
    %839 = vmatprep.subr.mxu0 %v567
    %840 = vmatpush1.msra.mxu0 %v566
    %841 = vmatprep.subr.mxu0 %v630
    %842 = vmatpush1.msra.mxu0 %v629
    %843 = vmatprep.subr.mxu0 %v637
    %844 = vmatpush1.msra.mxu0 %v636
    %845 = vmatprep.subr.mxu0 %v700
    %846 = vmatpush1.msra.mxu0 %v699
    %847 = vmatprep.subr.mxu0 %v707
    %848 = vmatpush1.msra.mxu0 %v706
    %849 = vmatprep.subr.mxu0 0.0
    %850 = vmatpush1.msra.mxu0 0.0
    %851 = vmatprep.subr.mxu0 0.0
    %852 = vmatpush1.msra.mxu0 0.0
    %853 = vmatprep.subr.mxu0 0.0
    %854 = vmatpush1.msra.mxu0 0.0
    %855 = vmatprep.subr.mxu0 0.0
    %856 = vmatpush1.msra.mxu0 0.0
    %857 = vmatprep.subr.mxu0 0.0
    %858 = vmatpush1.msra.mxu0 0.0
    %859 = vmatprep.subr.mxu0 0.0
    %860 = vmatpush1.msra.mxu0 0.0
    %861 = vmatprep.subr.mxu0 0.0
    %862 = vmatpush1.msra.mxu0 0.0
    %863 = vmatprep.subr.mxu0 0.0
    %864 = vmatpush1.msra.mxu0 0.0
    %865 = vmatprep.subr.mxu0 0.0
    %866 = vmatpush1.msra.mxu0 0.0
    %867 = vmatprep.subr.mxu0 0.0
    %868 = vmatpush1.msra.mxu0 0.0
    %869 = vmatprep.subr.mxu0 0.0
    %870 = vmatpush1.msra.mxu0 0.0
    %871 = vmatprep.subr.mxu0 0.0
    %872 = vmatpush1.msra.mxu0 0.0
    %873 = vmatprep.subr.mxu0 0.0
    %874 = vmatpush1.msra.mxu0 0.0
    %875 = vmatprep.subr.mxu0 0.0
    %876 = vmatpush1.msra.mxu0 0.0
    %877 = vmatprep.mubr.f32.mxu0 %v787
    %878 = vmatmul.mubr.f32.gmra.mrb[0].mxu0 %v713
    %v879 = vpop.f32.mrb[0].mxu0
    %v880 = vadd.f32 %v743, %v879
    %v881 = vpop.f32.mrb[0].mxu0
    %v882 = vadd.f32 %v743, %v881
    %883 = vmatprep.mubr.f32.mxu0 %v790
    %884 = vmatmul.mubr.f32.gmra.mrb[0].mxu0 %v715
    %v885 = vpop.f32.mrb[0].mxu0
    %v886 = vadd.f32 %v748, %v885
    %v887 = vpop.f32.mrb[0].mxu0
    %v888 = vadd.f32 %v748, %v887
    %889 = vmatprep.mubr.f32.mxu0 %v793
    %890 = vmatmul.mubr.f32.gmra.mrb[0].mxu0 %v717
    %v891 = vpop.f32.mrb[0].mxu0
    %v892 = vadd.f32 %v753, %v891
    %v893 = vpop.f32.mrb[0].mxu0
    %v894 = vadd.f32 %v753, %v893
    %895 = vmatprep.mubr.f32.mxu0 %v796
    %896 = vmatmul.mubr.f32.gmra.mrb[0].mxu0 %v719
    %v897 = vpop.f32.mrb[0].mxu0
    %v898 = vadd.f32 %v758, %v897
    %v899 = vpop.f32.mrb[0].mxu0
    %v900 = vadd.f32 %v758, %v899
    %901 = vmatprep.mubr.f32.mxu0 %v799
    %902 = vmatmul.mubr.f32.gmra.mrb[0].mxu0 %v721
    %v903 = vpop.f32.mrb[0].mxu0
    %v904 = vadd.f32 %v763, %v903
    %v905 = vpop.f32.mrb[0].mxu0
    %v906 = vadd.f32 %v763, %v905
    %907 = vmatprep.mubr.f32.mxu0 %v802
    %908 = vmatmul.mubr.f32.gmra.mrb[0].mxu0 %v723
    %v909 = vpop.f32.mrb[0].mxu0
    %v910 = vadd.f32 %v768, %v909
    %v911 = vpop.f32.mrb[0].mxu0
    %v912 = vadd.f32 %v768, %v911
    %913 = vmatprep.mubr.f32.mxu0 %v805
    %914 = vmatmul.mubr.f32.gmra.mrb[0].mxu0 %v725
    %v915 = vpop.f32.mrb[0].mxu0
    %v916 = vadd.f32 %v773, %v915
    %v917 = vpop.f32.mrb[0].mxu0
    %v918 = vadd.f32 %v773, %v917
    %919 = vmatprep.mubr.f32.mxu0 %v808
    %920 = vmatmul.mubr.f32.gmra.mrb[0].mxu0 %v727
    %v921 = vpop.f32.mrb[0].mxu0
    %v922 = vadd.f32 %v778, %v921
    %v923 = vpop.f32.mrb[0].mxu0
    %v924 = vadd.f32 %v778, %v923
    %925 = vmatprep.mubr.f32.mxu0 %v811
    %926 = vmatmul.mubr.f32.gmra.mrb[0].mxu0 %v729
    %v927 = vpop.f32.mrb[0].mxu0
    %v928 = vadd.f32 %v783, %v927
    %v929 = vpop.f32.mrb[0].mxu0
    %v930 = vadd.f32 %v783, %v929
    %931 = vdwg.mxu0
    %932 = vmatprep.subr.mxu0 %v287
    %933 = vmatpush1.msra.mxu0 %v286
    %934 = vmatprep.subr.mxu0 %v294
    %935 = vmatpush1.msra.mxu0 %v293
    %936 = vmatprep.subr.mxu0 %v371
    %937 = vmatpush1.msra.mxu0 %v370
    %938 = vmatprep.subr.mxu0 %v378
    %939 = vmatpush1.msra.mxu0 %v377
    %940 = vmatprep.subr.mxu0 %v455
    %941 = vmatpush1.msra.mxu0 %v454
    %942 = vmatprep.subr.mxu0 %v462
    %943 = vmatpush1.msra.mxu0 %v461
    %944 = vmatprep.subr.mxu0 %v110
    %945 = vmatpush1.msra.mxu0 %v109
    %946 = vmatprep.subr.mxu0 %v117
    %947 = vmatpush1.msra.mxu0 %v116
    %948 = vmatprep.subr.mxu0 %v138
    %949 = vmatpush1.msra.mxu0 %v137
    %950 = vmatprep.subr.mxu0 %v145
    %951 = vmatpush1.msra.mxu0 %v144
    %952 = vmatprep.subr.mxu0 %v166
    %953 = vmatpush1.msra.mxu0 %v165
    %954 = vmatprep.subr.mxu0 %v173
    %955 = vmatpush1.msra.mxu0 %v172
    %956 = vmatprep.subr.mxu0 %v562
    %957 = vmatpush1.msra.mxu0 %v561
    %958 = vmatprep.subr.mxu0 %v569
    %959 = vmatpush1.msra.mxu0 %v568
    %960 = vmatprep.subr.mxu0 %v632
    %961 = vmatpush1.msra.mxu0 %v631
    %962 = vmatprep.subr.mxu0 %v639
    %963 = vmatpush1.msra.mxu0 %v638
    %964 = vmatprep.subr.mxu0 %v702
    %965 = vmatpush1.msra.mxu0 %v701
    %966 = vmatprep.subr.mxu0 %v709
    %967 = vmatpush1.msra.mxu0 %v708
    %968 = vmatprep.subr.mxu0 0.0
    %969 = vmatpush1.msra.mxu0 0.0
    %970 = vmatprep.subr.mxu0 0.0
    %971 = vmatpush1.msra.mxu0 0.0
    %972 = vmatprep.subr.mxu0 0.0
    %973 = vmatpush1.msra.mxu0 0.0
    %974 = vmatprep.subr.mxu0 0.0
    %975 = vmatpush1.msra.mxu0 0.0
    %976 = vmatprep.subr.mxu0 0.0
    %977 = vmatpush1.msra.mxu0 0.0
    %978 = vmatprep.subr.mxu0 0.0
    %979 = vmatpush1.msra.mxu0 0.0
    %980 = vmatprep.subr.mxu0 0.0
    %981 = vmatpush1.msra.mxu0 0.0
    %982 = vmatprep.subr.mxu0 0.0
    %983 = vmatpush1.msra.mxu0 0.0
    %984 = vmatprep.subr.mxu0 0.0
    %985 = vmatpush1.msra.mxu0 0.0
    %986 = vmatprep.subr.mxu0 0.0
    %987 = vmatpush1.msra.mxu0 0.0
    %988 = vmatprep.subr.mxu0 0.0
    %989 = vmatpush1.msra.mxu0 0.0
    %990 = vmatprep.subr.mxu0 0.0
    %991 = vmatpush1.msra.mxu0 0.0
    %992 = vmatprep.subr.mxu0 0.0
    %993 = vmatpush1.msra.mxu0 0.0
    %994 = vmatprep.subr.mxu0 0.0
    %995 = vmatpush1.msra.mxu0 0.0
    %996 = vmatprep.mubr.f32.mxu0 %v787
    %997 = vmatmul.mubr.f32.gmra.mrb[0].mxu0 %v713
    %v998 = vpop.f32.mrb[0].mxu0
    %v999 = vadd.f32 %v743, %v998
    %v1000 = vpop.f32.mrb[0].mxu0
    %v1001 = vadd.f32 %v743, %v1000
    %1002 = vmatprep.mubr.f32.mxu0 %v790
    %1003 = vmatmul.mubr.f32.gmra.mrb[0].mxu0 %v715
    %v1004 = vpop.f32.mrb[0].mxu0
    %v1005 = vadd.f32 %v748, %v1004
    %v1006 = vpop.f32.mrb[0].mxu0
    %v1007 = vadd.f32 %v748, %v1006
    %1008 = vmatprep.mubr.f32.mxu0 %v793
    %1009 = vmatmul.mubr.f32.gmra.mrb[0].mxu0 %v717
    %v1010 = vpop.f32.mrb[0].mxu0
    %v1011 = vadd.f32 %v753, %v1010
    %v1012 = vpop.f32.mrb[0].mxu0
    %v1013 = vadd.f32 %v753, %v1012
    %1014 = vmatprep.mubr.f32.mxu0 %v796
    %1015 = vmatmul.mubr.f32.gmra.mrb[0].mxu0 %v719
    %v1016 = vpop.f32.mrb[0].mxu0
    %v1017 = vadd.f32 %v758, %v1016
    %v1018 = vpop.f32.mrb[0].mxu0
    %v1019 = vadd.f32 %v758, %v1018
    %1020 = vmatprep.mubr.f32.mxu0 %v799
    %1021 = vmatmul.mubr.f32.gmra.mrb[0].mxu0 %v721
    %v1022 = vpop.f32.mrb[0].mxu0
    %v1023 = vadd.f32 %v763, %v1022
    %v1024 = vpop.f32.mrb[0].mxu0
    %v1025 = vadd.f32 %v763, %v1024
    %1026 = vmatprep.mubr.f32.mxu0 %v802
    %1027 = vmatmul.mubr.f32.gmra.mrb[0].mxu0 %v723
    %v1028 = vpop.f32.mrb[0].mxu0
    %v1029 = vadd.f32 %v768, %v1028
    %v1030 = vpop.f32.mrb[0].mxu0
    %v1031 = vadd.f32 %v768, %v1030
    %1032 = vmatprep.mubr.f32.mxu0 %v805
    %1033 = vmatmul.mubr.f32.gmra.mrb[0].mxu0 %v725
    %v1034 = vpop.f32.mrb[0].mxu0
    %v1035 = vadd.f32 %v773, %v1034
    %v1036 = vpop.f32.mrb[0].mxu0
    %v1037 = vadd.f32 %v773, %v1036
    %1038 = vmatprep.mubr.f32.mxu0 %v808
    %1039 = vmatmul.mubr.f32.gmra.mrb[0].mxu0 %v727
    %v1040 = vpop.f32.mrb[0].mxu0
    %v1041 = vadd.f32 %v778, %v1040
    %v1042 = vpop.f32.mrb[0].mxu0
    %v1043 = vadd.f32 %v778, %v1042
    %1044 = vmatprep.mubr.f32.mxu0 %v811
    %1045 = vmatmul.mubr.f32.gmra.mrb[0].mxu0 %v729
    %v1046 = vpop.f32.mrb[0].mxu0
    %v1047 = vadd.f32 %v783, %v1046
    %v1048 = vpop.f32.mrb[0].mxu0
    %v1049 = vadd.f32 %v783, %v1048
    %1050 = vdwg.mxu0
    %1051 = vmatprep.subr.mxu0 %v289
    %1052 = vmatpush1.msra.mxu0 %v288
    %1053 = vmatprep.subr.mxu0 %v296
    %1054 = vmatpush1.msra.mxu0 %v295
    %1055 = vmatprep.subr.mxu0 %v373
    %1056 = vmatpush1.msra.mxu0 %v372
    %1057 = vmatprep.subr.mxu0 %v380
    %1058 = vmatpush1.msra.mxu0 %v379
    %1059 = vmatprep.subr.mxu0 %v457
    %1060 = vmatpush1.msra.mxu0 %v456
    %1061 = vmatprep.subr.mxu0 %v464
    %1062 = vmatpush1.msra.mxu0 %v463
    %1063 = vmatprep.subr.mxu0 %v112
    %1064 = vmatpush1.msra.mxu0 %v111
    %1065 = vmatprep.subr.mxu0 %v119
    %1066 = vmatpush1.msra.mxu0 %v118
    %1067 = vmatprep.subr.mxu0 %v140
    %1068 = vmatpush1.msra.mxu0 %v139
    %1069 = vmatprep.subr.mxu0 %v147
    %1070 = vmatpush1.msra.mxu0 %v146
    %1071 = vmatprep.subr.mxu0 %v168
    %1072 = vmatpush1.msra.mxu0 %v167
    %1073 = vmatprep.subr.mxu0 %v175
    %1074 = vmatpush1.msra.mxu0 %v174
    %1075 = vmatprep.subr.mxu0 %v564
    %1076 = vmatpush1.msra.mxu0 %v563
    %1077 = vmatprep.subr.mxu0 %v571
    %1078 = vmatpush1.msra.mxu0 %v570
    %1079 = vmatprep.subr.mxu0 %v634
    %1080 = vmatpush1.msra.mxu0 %v633
    %1081 = vmatprep.subr.mxu0 %v641
    %1082 = vmatpush1.msra.mxu0 %v640
    %1083 = vmatprep.subr.mxu0 %v704
    %1084 = vmatpush1.msra.mxu0 %v703
    %1085 = vmatprep.subr.mxu0 %v711
    %1086 = vmatpush1.msra.mxu0 %v710
    %1087 = vmatprep.subr.mxu0 0.0
    %1088 = vmatpush1.msra.mxu0 0.0
    %1089 = vmatprep.subr.mxu0 0.0
    %1090 = vmatpush1.msra.mxu0 0.0
    %1091 = vmatprep.subr.mxu0 0.0
    %1092 = vmatpush1.msra.mxu0 0.0
    %1093 = vmatprep.subr.mxu0 0.0
    %1094 = vmatpush1.msra.mxu0 0.0
    %1095 = vmatprep.subr.mxu0 0.0
    %1096 = vmatpush1.msra.mxu0 0.0
    %1097 = vmatprep.subr.mxu0 0.0
    %1098 = vmatpush1.msra.mxu0 0.0
    %1099 = vmatprep.subr.mxu0 0.0
    %1100 = vmatpush1.msra.mxu0 0.0
    %1101 = vmatprep.subr.mxu0 0.0
    %1102 = vmatpush1.msra.mxu0 0.0
    %1103 = vmatprep.subr.mxu0 0.0
    %1104 = vmatpush1.msra.mxu0 0.0
    %1105 = vmatprep.subr.mxu0 0.0
    %1106 = vmatpush1.msra.mxu0 0.0
    %1107 = vmatprep.subr.mxu0 0.0
    %1108 = vmatpush1.msra.mxu0 0.0
    %1109 = vmatprep.subr.mxu0 0.0
    %1110 = vmatpush1.msra.mxu0 0.0
    %1111 = vmatprep.subr.mxu0 0.0
    %1112 = vmatpush1.msra.mxu0 0.0
    %1113 = vmatprep.subr.mxu0 0.0
    %1114 = vmatpush1.msra.mxu0 0.0
    %1115 = vmatprep.mubr.f32.mxu0 %v787
    %1116 = vmatmul.mubr.f32.gmra.mrb[0].mxu0 %v713
    %v1117 = vpop.f32.mrb[0].mxu0
    %v1118 = vadd.f32 %v743, %v1117
    %v1119 = vpop.f32.mrb[0].mxu0
    %v1120 = vadd.f32 %v743, %v1119
    %1121 = vmatprep.mubr.f32.mxu0 %v790
    %1122 = vmatmul.mubr.f32.gmra.mrb[0].mxu0 %v715
    %v1123 = vpop.f32.mrb[0].mxu0
    %v1124 = vadd.f32 %v748, %v1123
    %v1125 = vpop.f32.mrb[0].mxu0
    %v1126 = vadd.f32 %v748, %v1125
    %1127 = vmatprep.mubr.f32.mxu0 %v793
    %1128 = vmatmul.mubr.f32.gmra.mrb[0].mxu0 %v717
    %v1129 = vpop.f32.mrb[0].mxu0
    %v1130 = vadd.f32 %v753, %v1129
    %v1131 = vpop.f32.mrb[0].mxu0
    %v1132 = vadd.f32 %v753, %v1131
    %1133 = vmatprep.mubr.f32.mxu0 %v796
    %1134 = vmatmul.mubr.f32.gmra.mrb[0].mxu0 %v719
    %v1135 = vpop.f32.mrb[0].mxu0
    %v1136 = vadd.f32 %v758, %v1135
    %v1137 = vpop.f32.mrb[0].mxu0
    %v1138 = vadd.f32 %v758, %v1137
    %1139 = vmatprep.mubr.f32.mxu0 %v799
    %1140 = vmatmul.mubr.f32.gmra.mrb[0].mxu0 %v721
    %v1141 = vpop.f32.mrb[0].mxu0
    %v1142 = vadd.f32 %v763, %v1141
    %v1143 = vpop.f32.mrb[0].mxu0
    %v1144 = vadd.f32 %v763, %v1143
    %1145 = vmatprep.mubr.f32.mxu0 %v802
    %1146 = vmatmul.mubr.f32.gmra.mrb[0].mxu0 %v723
    %v1147 = vpop.f32.mrb[0].mxu0
    %v1148 = vadd.f32 %v768, %v1147
    %v1149 = vpop.f32.mrb[0].mxu0
    %v1150 = vadd.f32 %v768, %v1149
    %1151 = vmatprep.mubr.f32.mxu0 %v805
    %1152 = vmatmul.mubr.f32.gmra.mrb[0].mxu0 %v725
    %v1153 = vpop.f32.mrb[0].mxu0
    %v1154 = vadd.f32 %v773, %v1153
    %v1155 = vpop.f32.mrb[0].mxu0
    %v1156 = vadd.f32 %v773, %v1155
    %1157 = vmatprep.mubr.f32.mxu0 %v808
    %1158 = vmatmul.mubr.f32.gmra.mrb[0].mxu0 %v727
    %v1159 = vpop.f32.mrb[0].mxu0
    %v1160 = vadd.f32 %v778, %v1159
    %v1161 = vpop.f32.mrb[0].mxu0
    %v1162 = vadd.f32 %v778, %v1161
    %1163 = vmatprep.mubr.f32.mxu0 %v811
    %1164 = vmatmul.mubr.f32.gmra.mrb[0].mxu0 %v729
    %v1165 = vpop.f32.mrb[0].mxu0
    %v1166 = vadd.f32 %v783, %v1165
    %v1167 = vpop.f32.mrb[0].mxu0
    %v1168 = vadd.f32 %v783, %v1167
    %1169 = vdwg.mxu0
    %1170 = vmatprep.subr.mxu0 0.0
    %1171 = vmatpush1.msra.mxu0 %v290
    %1172 = vmatprep.subr.mxu0 0.0
    %1173 = vmatpush1.msra.mxu0 %v297
    %1174 = vmatprep.subr.mxu0 0.0
    %1175 = vmatpush1.msra.mxu0 %v374
    %1176 = vmatprep.subr.mxu0 0.0
    %1177 = vmatpush1.msra.mxu0 %v381
    %1178 = vmatprep.subr.mxu0 0.0
    %1179 = vmatpush1.msra.mxu0 %v458
    %1180 = vmatprep.subr.mxu0 0.0
    %1181 = vmatpush1.msra.mxu0 %v465
    %1182 = vmatprep.subr.mxu0 0.0
    %1183 = vmatpush1.msra.mxu0 %v113
    %1184 = vmatprep.subr.mxu0 0.0
    %1185 = vmatpush1.msra.mxu0 %v120
    %1186 = vmatprep.subr.mxu0 0.0
    %1187 = vmatpush1.msra.mxu0 %v141
    %1188 = vmatprep.subr.mxu0 0.0
    %1189 = vmatpush1.msra.mxu0 %v148
    %1190 = vmatprep.subr.mxu0 0.0
    %1191 = vmatpush1.msra.mxu0 %v169
    %1192 = vmatprep.subr.mxu0 0.0
    %1193 = vmatpush1.msra.mxu0 %v176
    %1194 = vmatprep.subr.mxu0 0.0
    %1195 = vmatpush1.msra.mxu0 %v565
    %1196 = vmatprep.subr.mxu0 0.0
    %1197 = vmatpush1.msra.mxu0 %v572
    %1198 = vmatprep.subr.mxu0 0.0
    %1199 = vmatpush1.msra.mxu0 %v635
    %1200 = vmatprep.subr.mxu0 0.0
    %1201 = vmatpush1.msra.mxu0 %v642
    %1202 = vmatprep.subr.mxu0 0.0
    %1203 = vmatpush1.msra.mxu0 %v705
    %1204 = vmatprep.subr.mxu0 0.0
    %1205 = vmatpush1.msra.mxu0 %v712
    %1206 = vmatprep.subr.mxu0 0.0
    %1207 = vmatpush1.msra.mxu0 0.0
    %1208 = vmatprep.subr.mxu0 0.0
    %1209 = vmatpush1.msra.mxu0 0.0
    %1210 = vmatprep.subr.mxu0 0.0
    %1211 = vmatpush1.msra.mxu0 0.0
    %1212 = vmatprep.subr.mxu0 0.0
    %1213 = vmatpush1.msra.mxu0 0.0
    %1214 = vmatprep.subr.mxu0 0.0
    %1215 = vmatpush1.msra.mxu0 0.0
    %1216 = vmatprep.subr.mxu0 0.0
    %1217 = vmatpush1.msra.mxu0 0.0
    %1218 = vmatprep.subr.mxu0 0.0
    %1219 = vmatpush1.msra.mxu0 0.0
    %1220 = vmatprep.subr.mxu0 0.0
    %1221 = vmatpush1.msra.mxu0 0.0
    %1222 = vmatprep.subr.mxu0 0.0
    %1223 = vmatpush1.msra.mxu0 0.0
    %1224 = vmatprep.subr.mxu0 0.0
    %1225 = vmatpush1.msra.mxu0 0.0
    %1226 = vmatprep.subr.mxu0 0.0
    %1227 = vmatpush1.msra.mxu0 0.0
    %1228 = vmatprep.subr.mxu0 0.0
    %1229 = vmatpush1.msra.mxu0 0.0
    %1230 = vmatprep.subr.mxu0 0.0
    %1231 = vmatpush1.msra.mxu0 0.0
    %1232 = vmatprep.subr.mxu0 0.0
    %1233 = vmatpush1.msra.mxu0 0.0
    %1234 = vmatprep.mubr.f32.mxu0 %v787
    %1235 = vmatmul.mubr.f32.gmra.mrb[0].mxu0 %v713
    %v1236 = vpop.f32.mrb[0].mxu0
    %v1237 = vadd.f32 %v743, %v1236
    %v1238 = vpop.f32.mrb[0].mxu0
    %1239 = vmatprep.mubr.f32.mxu0 %v790
    %1240 = vmatmul.mubr.f32.gmra.mrb[0].mxu0 %v715
    %v1241 = vpop.f32.mrb[0].mxu0
    %v1242 = vadd.f32 %v748, %v1241
    %v1243 = vpop.f32.mrb[0].mxu0
    %1244 = vmatprep.mubr.f32.mxu0 %v793
    %1245 = vmatmul.mubr.f32.gmra.mrb[0].mxu0 %v717
    %v1246 = vpop.f32.mrb[0].mxu0
    %v1247 = vadd.f32 %v753, %v1246
    %v1248 = vpop.f32.mrb[0].mxu0
    %1249 = vmatprep.mubr.f32.mxu0 %v796
    %1250 = vmatmul.mubr.f32.gmra.mrb[0].mxu0 %v719
    %v1251 = vpop.f32.mrb[0].mxu0
    %v1252 = vadd.f32 %v758, %v1251
    %v1253 = vpop.f32.mrb[0].mxu0
    %1254 = vmatprep.mubr.f32.mxu0 %v799
    %1255 = vmatmul.mubr.f32.gmra.mrb[0].mxu0 %v721
    %v1256 = vpop.f32.mrb[0].mxu0
    %v1257 = vadd.f32 %v763, %v1256
    %v1258 = vpop.f32.mrb[0].mxu0
    %1259 = vmatprep.mubr.f32.mxu0 %v802
    %1260 = vmatmul.mubr.f32.gmra.mrb[0].mxu0 %v723
    %v1261 = vpop.f32.mrb[0].mxu0
    %v1262 = vadd.f32 %v768, %v1261
    %v1263 = vpop.f32.mrb[0].mxu0
    %1264 = vmatprep.mubr.f32.mxu0 %v805
    %1265 = vmatmul.mubr.f32.gmra.mrb[0].mxu0 %v725
    %v1266 = vpop.f32.mrb[0].mxu0
    %v1267 = vadd.f32 %v773, %v1266
    %v1268 = vpop.f32.mrb[0].mxu0
    %1269 = vmatprep.mubr.f32.mxu0 %v808
    %1270 = vmatmul.mubr.f32.gmra.mrb[0].mxu0 %v727
    %v1271 = vpop.f32.mrb[0].mxu0
    %v1272 = vadd.f32 %v778, %v1271
    %v1273 = vpop.f32.mrb[0].mxu0
    %1274 = vmatprep.mubr.f32.mxu0 %v811
    %1275 = vmatmul.mubr.f32.gmra.mrb[0].mxu0 %v729
    %v1276 = vpop.f32.mrb[0].mxu0
    %v1277 = vadd.f32 %v783, %v1276
    %v1278 = vpop.f32.mrb[0].mxu0
    %1279 = vdwg.mxu0
    %1280 = vst [vmem:[#allocation8] sm:$0xff] %v880
    %1281 = vst [vmem:[#allocation8 + $0x8] sm:$0xff] %v882
    %1282 = vst [vmem:[#allocation8 + $0x10] sm:$0xff] %v999
    %1283 = vst [vmem:[#allocation8 + $0x18] sm:$0xff] %v1001
    %1284 = vst [vmem:[#allocation8 + $0x20] sm:$0xff] %v1118
    %1285 = vst [vmem:[#allocation8 + $0x28] sm:$0xff] %v1120
    %1286 = vst [vmem:[#allocation8 + $0x30] sm:$0xff] %v1237
    %1287 = vst [vmem:[#allocation8 + $0x38] sm:$0xff] %v886
    %1288 = vst [vmem:[#allocation8 + $0x40] sm:$0xff] %v888
    %1289 = vst [vmem:[#allocation8 + $0x48] sm:$0xff] %v1005
    %1290 = vst [vmem:[#allocation8 + $0x50] sm:$0xff] %v1007
    %1291 = vst [vmem:[#allocation8 + $0x58] sm:$0xff] %v1124
    %1292 = vst [vmem:[#allocation8 + $0x60] sm:$0xff] %v1126
    %1293 = vst [vmem:[#allocation8 + $0x68] sm:$0xff] %v1242
    %1294 = vst [vmem:[#allocation8 + $0x70] sm:$0xff] %v892
    %1295 = vst [vmem:[#allocation8 + $0x78] sm:$0xff] %v894
    %1296 = vst [vmem:[#allocation8 + $0x80] sm:$0xff] %v1011
    %1297 = vst [vmem:[#allocation8 + $0x88] sm:$0xff] %v1013
    %1298 = vst [vmem:[#allocation8 + $0x90] sm:$0xff] %v1130
    %1299 = vst [vmem:[#allocation8 + $0x98] sm:$0xff] %v1132
    %1300 = vst [vmem:[#allocation8 + $0xa0] sm:$0xff] %v1247
    %1301 = vst [vmem:[#allocation8 + $0xa8] sm:$0xff] %v898
    %1302 = vst [vmem:[#allocation8 + $0xb0] sm:$0xff] %v900
    %1303 = vst [vmem:[#allocation8 + $0xb8] sm:$0xff] %v1017
    %1304 = vst [vmem:[#allocation8 + $0xc0] sm:$0xff] %v1019
    %1305 = vst [vmem:[#allocation8 + $0xc8] sm:$0xff] %v1136
    %1306 = vst [vmem:[#allocation8 + $0xd0] sm:$0xff] %v1138
    %1307 = vst [vmem:[#allocation8 + $0xd8] sm:$0xff] %v1252
    %1308 = vst [vmem:[#allocation8 + $0xe0] sm:$0xff] %v904
    %1309 = vst [vmem:[#allocation8 + $0xe8] sm:$0xff] %v906
    %1310 = vst [vmem:[#allocation8 + $0xf0] sm:$0xff] %v1023
    %1311 = vst [vmem:[#allocation8 + $0xf8] sm:$0xff] %v1025
    %1312 = vst [vmem:[#allocation8 + $0x100] sm:$0xff] %v1142
    %1313 = vst [vmem:[#allocation8 + $0x108] sm:$0xff] %v1144
    %1314 = vst [vmem:[#allocation8 + $0x110] sm:$0xff] %v1257
    %1315 = vst [vmem:[#allocation8 + $0x118] sm:$0xff] %v910
    %1316 = vst [vmem:[#allocation8 + $0x120] sm:$0xff] %v912
    %1317 = vst [vmem:[#allocation8 + $0x128] sm:$0xff] %v1029
    %1318 = vst [vmem:[#allocation8 + $0x130] sm:$0xff] %v1031
    %1319 = vst [vmem:[#allocation8 + $0x138] sm:$0xff] %v1148
    %1320 = vst [vmem:[#allocation8 + $0x140] sm:$0xff] %v1150
    %1321 = vst [vmem:[#allocation8 + $0x148] sm:$0xff] %v1262
    %1322 = vst [vmem:[#allocation8 + $0x150] sm:$0xff] %v916
    %1323 = vst [vmem:[#allocation8 + $0x158] sm:$0xff] %v918
    %1324 = vst [vmem:[#allocation8 + $0x160] sm:$0xff] %v1035
    %1325 = vst [vmem:[#allocation8 + $0x168] sm:$0xff] %v1037
    %1326 = vst [vmem:[#allocation8 + $0x170] sm:$0xff] %v1154
    %1327 = vst [vmem:[#allocation8 + $0x178] sm:$0xff] %v1156
    %1328 = vst [vmem:[#allocation8 + $0x180] sm:$0xff] %v1267
    %1329 = vst [vmem:[#allocation8 + $0x188] sm:$0xff] %v922
    %1330 = vst [vmem:[#allocation8 + $0x190] sm:$0xff] %v924
    %1331 = vst [vmem:[#allocation8 + $0x198] sm:$0xff] %v1041
    %1332 = vst [vmem:[#allocation8 + $0x1a0] sm:$0xff] %v1043
    %1333 = vst [vmem:[#allocation8 + $0x1a8] sm:$0xff] %v1160
    %1334 = vst [vmem:[#allocation8 + $0x1b0] sm:$0xff] %v1162
    %1335 = vst [vmem:[#allocation8 + $0x1b8] sm:$0xff] %v1272
    %1336 = vst [vmem:[#allocation8 + $0x1c0] sm:$0x1f] %v928
    %1337 = vst [vmem:[#allocation8 + $0x1c8] sm:$0x1f] %v930
    %1338 = vst [vmem:[#allocation8 + $0x1d0] sm:$0x1f] %v1047
    %1339 = vst [vmem:[#allocation8 + $0x1d8] sm:$0x1f] %v1049
    %1340 = vst [vmem:[#allocation8 + $0x1e0] sm:$0x1f] %v1166
    %1341 = vst [vmem:[#allocation8 + $0x1e8] sm:$0x1f] %v1168
    %1342 = vst [vmem:[#allocation8 + $0x1f0] sm:$0x1f] %v1277
    // Predicated region
    $region34: #{tpu_custom_call.1} parent=1 // pred_check
      _
    $region35: #{tpu_custom_call.1} parent=1 // pred_check_branch
      %1344 = sbr.rel (0) target = $region37
    $region36: #{tpu_custom_call.1} parent=1 // pred_region
      %s1346 = ssub.s32 8064, 8064
      %1347 = vsyncadd [#allocation4], %s1346
      %s1348 = sshll.u32 [#allocation8], 4
      %s1349 = int_to_ptr.vmem [resolvable:$true] %s1348
      %1354 = dma.vmem_to_hbm [thread:$0]  %s1349, 8064, %s5, [#allocation4], 896, 896, 56
    $region37: #{tpu_custom_call.1} parent=1 // pred_fallthru
      _
    // Predicated region
    $region38: #{tpu_custom_call.1} parent=1 // pred_check
      _
    $region39: #{tpu_custom_call.1} parent=1 // pred_check_branch
      %1356 = sbr.rel (0) target = $region41
    $region40: #{tpu_custom_call.1} parent=1 // pred_region
      %1357 = dma.done [#allocation4], 8064
    $region41: #{tpu_custom_call.1} parent=1 // pred_fallthru
      _
    %1358 = vsyncpa [#allocation3], 1
    %1359 = vsyncpa [#allocation6], 1
    %1360 = vsyncpa [#allocation4], 1

</llo_original>
